<compile_context>
chip_gen: v7x
topology: tpu7x:2x2x1
jax: 0.10.0
libtpu: 0.0.40
codegen_flags: <defaults>
</compile_context>

<pallas_src>
import math

import jax
import jax.numpy as jnp
from jax.experimental import pallas as pl
from jax.experimental.pallas import tpu as pltpu


# ---------------------------------------------------------------------------
# Kernels
# ---------------------------------------------------------------------------

def feature_regression_fused_kernel(x_ref, wt_ref, b_ref, o_ref):
    """Single-K path.  grid = (B/tm, N/tn).

    x_ref : (tm, Np)  full reduction dim resident in VMEM
    wt_ref: (Np, tn)  pre-masked (zero diagonal), pre-transposed, zero-padded W.T
    b_ref : (1,  tn)  bias slice
    """
    acc = jnp.dot(x_ref[...], wt_ref[...], preferred_element_type=jnp.float32)
    o_ref[...] = (acc + b_ref[...].astype(jnp.float32)).astype(o_ref.dtype)


def feature_regression_acc_kernel(x_ref, wt_ref, b_ref, o_ref, acc_ref):
    """Multi-K fallback.  grid = (B/tm, N/tn, K/tk); K last, 'arbitrary'."""
    k = pl.program_id(2)

    @pl.when(k == 0)
    def _():
        acc_ref[...] = jnp.zeros_like(acc_ref)

    acc_ref[...] += jnp.dot(x_ref[...], wt_ref[...],
                            preferred_element_type=jnp.float32)

    @pl.when(k == pl.num_programs(2) - 1)
    def _():
        o_ref[...] = (acc_ref[...] + b_ref[...].astype(jnp.float32)
                      ).astype(o_ref.dtype)


# ---------------------------------------------------------------------------
# Tiling helpers
# ---------------------------------------------------------------------------

def _sublane(dtype):
    """Dtype-aware minimum sublane tiling: (8,128) f32, (16,128) bf16, (32,128) i8/fp8."""
    bits = jnp.dtype(dtype).itemsize * 8
    if bits >= 32:
        return 8
    if bits == 16:
        return 16
    return 32


def _vmem_limit_and_budget():
    """Scoped-VMEM limit to request + tile working-set budget, per generation."""
    cap = 64 * 1024 * 1024          # safe default = v7x physical (smallest)
    try:
        cap = int(pltpu.get_tpu_info().vmem_capacity_bytes)
    except Exception:
        pass
    limit = min((cap * 3) // 4, 96 * 1024 * 1024)   # 48 MiB on v7x, 96 MiB on v5e/v6e
    budget = int(limit * 0.6)                       # headroom for compiler scratch
    return limit, budget


def _fit_tiles(Bp0, Np, x_itemsize, w_itemsize, out_itemsize, budget):
    """Pick (tm, tn, tk): prefer large tm (stream W once), then full-K, then wide tn."""
    if Bp0 <= 512:
        tm_opts = [Bp0]
    else:
        tm_opts = [512, 256, 128]
    tn_opts = [c for c in (1024, 512, 256, 128) if c <= Np and Np % c == 0]
    tk_opts = [Np] + [c for c in (4096, 2048, 1024, 512, 256, 128)
                      if c < Np and Np % c == 0]

    def working_set(tm, tn, tk):
        k_steps = Np // tk
        ws = 2 * (tm * tk) * x_itemsize            # x block (double-buffered)
        ws += 2 * (tk * tn + tn) * w_itemsize      # W.T + bias blocks
        ws += 2 * (tm * tn) * out_itemsize         # output block
        if k_steps > 1:
            ws += tm * tn * 4                      # f32 accumulator scratch
        return ws

    for tm in tm_opts:
        for tk in tk_opts:            # collapse K before widening tn
            for tn in tn_opts:
                if working_set(tm, tn, tk) <= budget:
                    return tm, tn, tk
    return tm_opts[-1], 128, 128


# ---------------------------------------------------------------------------
# Wrapper
# ---------------------------------------------------------------------------

def feature_regression(x, W, b):
    """x: (B, N), W: (N, N), b: (N,) -> (B, N) == F.linear(x, W*(1-I), b)."""
    B, N = x.shape
    assert W.shape == (N, N) and b.shape == (N,)

    LANE = 128
    SUB = _sublane(x.dtype)
    Np = max(LANE, ((N + LANE - 1) // LANE) * LANE)     # lane-dense columns
    Bp0 = max(SUB, ((B + SUB - 1) // SUB) * SUB)        # sublane-aligned rows

    vmem_limit, budget = _vmem_limit_and_budget()
    x_it = jnp.dtype(x.dtype).itemsize
    w_it = jnp.dtype(W.dtype).itemsize
    o_it = x_it
    tm, tn, tk = _fit_tiles(Bp0, Np, x_it, w_it, o_it, budget)

    # Pad batch up to a multiple of tm (never shrink tm to fit an odd batch).
    Bp = ((Bp0 + tm - 1) // tm) * tm

    # Keep both v7x TensorCores busy if the (M, N) grid collapses to 1x1.
    if Bp // tm == 1 and Np // tn == 1 and tn % 256 == 0:
        tn //= 2

    # One-time wrapper-side prep: zero the diagonal of W (this IS the mask),
    # transpose, and zero-pad.  Padded rows/cols contribute zeros and are
    # sliced away below, so the result is exact.
    idx = jnp.arange(N)
    w_masked = W.at[idx, idx].set(jnp.zeros((N,), W.dtype))
    wt = jnp.zeros((Np, Np), W.dtype).at[:N, :N].set(w_masked.T)
    b2d = jnp.zeros((1, Np), b.dtype).at[0, :N].set(b)
    xp = jnp.zeros((Bp, Np), x.dtype).at[:B, :N].set(x)

    m_tiles = Bp // tm
    cost = pl.CostEstimate(
        flops=2 * Bp * Np * Np,
        transcendentals=0,
        bytes_accessed=(xp.size * x_it            # x streamed once
                        + wt.size * w_it * m_tiles  # W re-streamed per row tile
                        + b2d.size * w_it
                        + Bp * Np * o_it),
    )

    if Np // tk == 1:
        # Single-K path: pure matmul + bias, no accumulator scratch.
        out = pl.pallas_call(
            feature_regression_fused_kernel,
            out_shape=jax.ShapeDtypeStruct((Bp, Np), x.dtype),
            grid_spec=pltpu.PrefetchScalarGridSpec(
                num_scalar_prefetch=0,
                grid=(Bp // tm, Np // tn),
                in_specs=[
                    pl.BlockSpec((tm, Np), lambda i, j: (i, 0)),   # x
                    pl.BlockSpec((Np, tn), lambda i, j: (0, j)),   # masked W.T
                    pl.BlockSpec((1, tn), lambda i, j: (0, j)),    # bias
                ],
                out_specs=pl.BlockSpec((tm, tn), lambda i, j: (i, j)),
            ),
            compiler_params=pltpu.CompilerParams(
                dimension_semantics=("parallel", "parallel"),
                vmem_limit_bytes=vmem_limit,
            ),
            cost_estimate=cost,
        )(xp, wt, b2d)
    else:
        # Large-N fallback: tiled reduction with resident f32 accumulator.
        out = pl.pallas_call(
            feature_regression_acc_kernel,
            out_shape=jax.ShapeDtypeStruct((Bp, Np), x.dtype),
            grid_spec=pltpu.PrefetchScalarGridSpec(
                num_scalar_prefetch=0,
                grid=(Bp // tm, Np // tn, Np // tk),
                in_specs=[
                    pl.BlockSpec((tm, tk), lambda i, j, k: (i, k)),  # x
                    pl.BlockSpec((tk, tn), lambda i, j, k: (k, j)),  # masked W.T
                    pl.BlockSpec((1, tn), lambda i, j, k: (0, j)),   # bias
                ],
                out_specs=pl.BlockSpec((tm, tn), lambda i, j, k: (i, j)),
                scratch_shapes=[pltpu.VMEM((tm, tn), jnp.float32)],
            ),
            compiler_params=pltpu.CompilerParams(
                dimension_semantics=("parallel", "parallel", "arbitrary"),
                vmem_limit_bytes=vmem_limit,
            ),
            cost_estimate=cost,
        )(xp, wt, b2d)

    return out[:B, :N]


def reference(x, W, b):
    N = W.shape[0]
    m = jnp.ones((N, N), x.dtype) - jnp.eye(N, dtype=x.dtype)
    return x @ (W * m).T + b


if __name__ == "__main__":
    # NOTE: at this toy 8x32 shape the call is pure launch/DMA overhead; the
    # tiled design above only pays off at realistic (>=128-wide) sizes.
    input_size = 32
    batch = 8

    key = jax.random.PRNGKey(0)
    kx, kw, kb = jax.random.split(key, 3)

    # Deterministic init mirroring reset_parameters(): uniform(-stdv, stdv).
    stdv = 1.0 / math.sqrt(input_size)
    W = jax.random.uniform(kw, (input_size, input_size), jnp.float32, -stdv, stdv)
    b = jax.random.uniform(kb, (input_size,), jnp.float32, -stdv, stdv)
    x = jax.random.normal(kx, (batch, input_size), jnp.float32)

    out = feature_regression(x, W, b)
    out = jax.block_until_ready(out)

    ref = reference(x, W, b)
    assert out.shape == (batch, input_size)
    assert jnp.allclose(out, ref, atol=1e-5, rtol=1e-5), "mismatch vs reference"

    print("KERNEL_OK")
</pallas_src>

<mosaic_0001>
module attributes {stable_mosaic.version = 11 : i64} {
  func.func @feature_regression_fused_kernel(%arg0: i32, %arg1: i32, %arg2: memref<8x128xf32, #tpu.memory_space<vmem>>, %arg3: memref<128x128xf32, #tpu.memory_space<vmem>>, %arg4: memref<1x128xf32, #tpu.memory_space<vmem>>, %arg5: memref<8x128xf32, #tpu.memory_space<vmem>>) attributes {dimension_semantics = [#tpu.dimension_semantics<parallel>, #tpu.dimension_semantics<parallel>], iteration_bounds = array<i64: 1, 1>, scalar_prefetch = 0 : i64, scratch_operands = 0 : i64, tpu.core_type = #tpu.core_type<tc>, window_params = [{transform_indices = @transform_0, window_bounds = array<i64: 8, 128>}, {transform_indices = @transform_1, window_bounds = array<i64: 128, 128>}, {transform_indices = @transform_2, window_bounds = array<i64: 1, 128>}, {transform_indices = @transform_3, window_bounds = array<i64: 8, 128>}]} {
    %c0 = arith.constant 0 : index
    %c0_0 = arith.constant 0 : index
    %0 = vector.load %arg2[%c0, %c0_0] : memref<8x128xf32, #tpu.memory_space<vmem>>, vector<8x128xf32>
    %c0_1 = arith.constant 0 : index
    %c0_2 = arith.constant 0 : index
    %1 = vector.load %arg3[%c0_1, %c0_2] : memref<128x128xf32, #tpu.memory_space<vmem>>, vector<128x128xf32>
    %cst = arith.constant dense<0.000000e+00> : vector<8x128xf32>
    %2 = tpu.matmul %0, %1, %cst {dimension_numbers = #tpu.dot_dimension_numbers<[1], [0], [0], [1], [0, 0, 1, 1], [], []>} : vector<8x128xf32>, vector<128x128xf32>, vector<8x128xf32> -> vector<8x128xf32>
    %c0_3 = arith.constant 0 : index
    %c0_4 = arith.constant 0 : index
    %3 = vector.load %arg4[%c0_3, %c0_4] : memref<1x128xf32, #tpu.memory_space<vmem>>, vector<1x128xf32>
    %4 = vector.broadcast %3 : vector<1x128xf32> to vector<8x128xf32>
    %5 = arith.addf %2, %4 : vector<8x128xf32>
    %c0_5 = arith.constant 0 : index
    %c0_6 = arith.constant 0 : index
    %6 = vector.load %arg5[%c0_5, %c0_6] : memref<8x128xf32, #tpu.memory_space<vmem>>, vector<8x128xf32>
    tpu.vector_store %arg5[%c0_5, %c0_6], %5 {strides = array<i32>} : memref<8x128xf32, #tpu.memory_space<vmem>>, vector<8x128xf32>,
    return
  }
  func.func @transform_0(%arg0: i32, %arg1: i32) -> (i32, i32) {
    %c0_i32 = arith.constant 0 : i32
    %c0_i32_0 = arith.constant 0 : i32
    return %arg0, %c0_i32 : i32, i32
  }
  func.func @transform_1(%arg0: i32, %arg1: i32) -> (i32, i32) {
    %c0_i32 = arith.constant 0 : i32
    %c0_i32_0 = arith.constant 0 : i32
    return %c0_i32, %arg1 : i32, i32
  }
  func.func @transform_2(%arg0: i32, %arg1: i32) -> (i32, i32) {
    %c0_i32 = arith.constant 0 : i32
    %c0_i32_0 = arith.constant 0 : i32
    return %c0_i32, %arg1 : i32, i32
  }
  func.func @transform_3(%arg0: i32, %arg1: i32) -> (i32, i32) {
    %c0_i32 = arith.constant 0 : i32
    return %arg0, %arg1 : i32, i32
  }
}

</mosaic_0001>

<llo_original>
// kernel: tpu_custom_call.1
$region0: #{tpu_custom_call.1}
  #allocation0 [shape = 'u32[]', space=smem, size = 0x4, offset = 0x4, fixed_abs, tag = 'smem constant byte address 0x4 - core index']
  #allocation1 [shape = 'u32[144,128]{1,0:T(1,128)}', space=vmem, size = 0x12000, scoped, tag = 'internal scratch']
  %s0 = inlined_call_operand.hbm [shape: f32[8,128], index: 0, kind: input, shape index: {}]
  %s1 = inlined_call_operand.hbm [shape: f32[128,128], index: 1, kind: input, shape index: {}]
  %s2 = inlined_call_operand.vmem [shape: f32[1,128], index: 2, kind: input, shape index: {}]
  %s3 = inlined_call_operand.hbm [shape: f32[8,128], index: 3, kind: output, shape index: {}]
  %s4 = sld [smem:[#allocation0]]
  $region30: #{tpu_custom_call.1} parent=0
    _
  %s6 = ssub.s32 1, %s4
  %s7 = scalar_select 0, %s6, %s4
  $region1: #{tpu_custom_call.1} parent=0
    #allocation2 [shape = 'u8[4096]{0}', space=vmem, size = 0x1000, scoped, tag = 'input window, operand 0, single buffered']
    #allocation3 [shape = 's32[1]{0}', space=sflag, size = 0x4, scoped, tag = 'scoped memory for tpu_custom_call.1']
    #allocation4 [shape = 's32[1]{0}', space=sflag, size = 0x4, scoped, tag = 'scoped memory for tpu_custom_call.1']
    #allocation5 [shape = 'u8[65536]{0}', space=vmem, size = 0x10000, scoped, tag = 'input window, operand 1, single buffered']
    #allocation6 [shape = 's32[1]{0}', space=sflag, size = 0x4, scoped, tag = 'scoped memory for tpu_custom_call.1']
    #allocation7 [shape = 'u8[4096]{0}', space=vmem, size = 0x1000, scoped, tag = 'output window, operand 0, single buffered']
    %8 = vsyncpa [#allocation3], 0
    %9 = vsyncpa [#allocation6], 0
    %10 = vsyncpa [#allocation4], 0
    // Predicated region
    $region2: #{tpu_custom_call.1} parent=1 // pred_check
      _
    $region3: #{tpu_custom_call.1} parent=1 // pred_check_branch
      %12 = sbr.rel (0) target = $region5
    $region4: #{tpu_custom_call.1} parent=1 // pred_region
      %s14 = ssub.s32 128, 128
      %15 = vsyncadd [#allocation3], %s14
      %s17 = sshll.u32 [#allocation2], 4
      %s18 = int_to_ptr.vmem [resolvable:$true] %s17
      %20 = dma.hbm_to_vmem [thread:$0]  %s0, 128, %s18, [#allocation3]
    $region5: #{tpu_custom_call.1} parent=1 // pred_fallthru
      _
    // Predicated region
    $region6: #{tpu_custom_call.1} parent=1 // pred_check
      _
    $region7: #{tpu_custom_call.1} parent=1 // pred_check_branch
      %22 = sbr.rel (0) target = $region9
    $region8: #{tpu_custom_call.1} parent=1 // pred_region
      %s24 = ssub.s32 2048, 2048
      %25 = vsyncadd [#allocation6], %s24
      %s26 = sshll.u32 [#allocation5], 4
      %s27 = int_to_ptr.vmem [resolvable:$true] %s26
      %32 = dma.hbm_to_vmem [thread:$0]  %s1, 2048, %s27, [#allocation6], 128, 128, 8
    $region9: #{tpu_custom_call.1} parent=1 // pred_fallthru
      _
    // Predicated region
    $region10: #{tpu_custom_call.1} parent=1 // pred_check
      _
    $region11: #{tpu_custom_call.1} parent=1 // pred_check_branch
      %34 = sbr.rel (0) target = $region13
    $region12: #{tpu_custom_call.1} parent=1 // pred_region
      _
    $region13: #{tpu_custom_call.1} parent=1 // pred_fallthru
      _
    // Predicated region
    $region14: #{tpu_custom_call.1} parent=1 // pred_check
      _
    $region15: #{tpu_custom_call.1} parent=1 // pred_check_branch
      %36 = sbr.rel (0) target = $region17
    $region16: #{tpu_custom_call.1} parent=1 // pred_region
      %37 = dma.done [#allocation3], 128
    $region17: #{tpu_custom_call.1} parent=1 // pred_fallthru
      _
    // Predicated region
    $region18: #{tpu_custom_call.1} parent=1 // pred_check
      _
    $region19: #{tpu_custom_call.1} parent=1 // pred_check_branch
      %39 = sbr.rel (0) target = $region21
    $region20: #{tpu_custom_call.1} parent=1 // pred_region
      %40 = dma.done [#allocation6], 2048
    $region21: #{tpu_custom_call.1} parent=1 // pred_fallthru
      _
    %v41 = vld [vmem:[#allocation2] sm:$0xff]
    %v42 = vld [vmem:[#allocation5] sm:$0xff]
    %v43 = vld [vmem:[#allocation5 + $0x8] sm:$0xff]
    %v44 = vld [vmem:[#allocation5 + $0x10] sm:$0xff]
    %v45 = vld [vmem:[#allocation5 + $0x18] sm:$0xff]
    %v46 = vld [vmem:[#allocation5 + $0x20] sm:$0xff]
    %v47 = vld [vmem:[#allocation5 + $0x28] sm:$0xff]
    %v48 = vld [vmem:[#allocation5 + $0x30] sm:$0xff]
    %v49 = vld [vmem:[#allocation5 + $0x38] sm:$0xff]
    %v50 = vld [vmem:[#allocation5 + $0x40] sm:$0xff]
    %v51 = vld [vmem:[#allocation5 + $0x48] sm:$0xff]
    %v52 = vld [vmem:[#allocation5 + $0x50] sm:$0xff]
    %v53 = vld [vmem:[#allocation5 + $0x58] sm:$0xff]
    %v54 = vld [vmem:[#allocation5 + $0x60] sm:$0xff]
    %v55 = vld [vmem:[#allocation5 + $0x68] sm:$0xff]
    %v56 = vld [vmem:[#allocation5 + $0x70] sm:$0xff]
    %v57 = vld [vmem:[#allocation5 + $0x78] sm:$0xff]
    %v58 = vld [vmem:[%s2] sm:$0x1]
    %v60 = vlaneseq
    %v61 = vshrl.u32 %v60, 7
    %v62 = vsub.s32 0, %v61
    %v63 = vrot.slane %v58, %v62
    %65 = vmatprep.subr.mxu0 0.0
    %66 = vmatpush1.msra.mxu0 %v42
    %67 = vmatprep.subr.mxu0 0.0
    %68 = vmatpush1.msra.mxu0 %v43
    %69 = vmatprep.subr.mxu0 0.0
    %70 = vmatpush1.msra.mxu0 %v44
    %71 = vmatprep.subr.mxu0 0.0
    %72 = vmatpush1.msra.mxu0 %v45
    %73 = vmatprep.subr.mxu0 0.0
    %74 = vmatpush1.msra.mxu0 %v46
    %75 = vmatprep.subr.mxu0 0.0
    %76 = vmatpush1.msra.mxu0 %v47
    %77 = vmatprep.subr.mxu0 0.0
    %78 = vmatpush1.msra.mxu0 %v48
    %79 = vmatprep.subr.mxu0 0.0
    %80 = vmatpush1.msra.mxu0 %v49
    %81 = vmatprep.subr.mxu0 0.0
    %82 = vmatpush1.msra.mxu0 %v50
    %83 = vmatprep.subr.mxu0 0.0
    %84 = vmatpush1.msra.mxu0 %v51
    %85 = vmatprep.subr.mxu0 0.0
    %86 = vmatpush1.msra.mxu0 %v52
    %87 = vmatprep.subr.mxu0 0.0
    %88 = vmatpush1.msra.mxu0 %v53
    %89 = vmatprep.subr.mxu0 0.0
    %90 = vmatpush1.msra.mxu0 %v54
    %91 = vmatprep.subr.mxu0 0.0
    %92 = vmatpush1.msra.mxu0 %v55
    %93 = vmatprep.subr.mxu0 0.0
    %94 = vmatpush1.msra.mxu0 %v56
    %95 = vmatprep.subr.mxu0 0.0
    %96 = vmatpush1.msra.mxu0 %v57
    %97 = vmatprep.subr.mxu0 0.0
    %98 = vmatpush1.msra.mxu0 0.0
    %99 = vmatprep.subr.mxu0 0.0
    %100 = vmatpush1.msra.mxu0 0.0
    %101 = vmatprep.subr.mxu0 0.0
    %102 = vmatpush1.msra.mxu0 0.0
    %103 = vmatprep.subr.mxu0 0.0
    %104 = vmatpush1.msra.mxu0 0.0
    %105 = vmatprep.subr.mxu0 0.0
    %106 = vmatpush1.msra.mxu0 0.0
    %107 = vmatprep.subr.mxu0 0.0
    %108 = vmatpush1.msra.mxu0 0.0
    %109 = vmatprep.subr.mxu0 0.0
    %110 = vmatpush1.msra.mxu0 0.0
    %111 = vmatprep.subr.mxu0 0.0
    %112 = vmatpush1.msra.mxu0 0.0
    %113 = vmatprep.subr.mxu0 0.0
    %114 = vmatpush1.msra.mxu0 0.0
    %115 = vmatprep.subr.mxu0 0.0
    %116 = vmatpush1.msra.mxu0 0.0
    %117 = vmatprep.subr.mxu0 0.0
    %118 = vmatpush1.msra.mxu0 0.0
    %119 = vmatprep.subr.mxu0 0.0
    %120 = vmatpush1.msra.mxu0 0.0
    %121 = vmatprep.subr.mxu0 0.0
    %122 = vmatpush1.msra.mxu0 0.0
    %123 = vmatprep.subr.mxu0 0.0
    %124 = vmatpush1.msra.mxu0 0.0
    %125 = vmatprep.subr.mxu0 0.0
    %126 = vmatpush1.msra.mxu0 0.0
    %127 = vmatprep.subr.mxu0 0.0
    %128 = vmatpush1.msra.mxu0 0.0
    %129 = vmatprep.mubr.f32.mxu0 0.0
    %130 = vmatmul.mubr.f32.gmra.mrb[0].mxu0 %v41
    %v131 = vpop.f32.mrb[0].mxu0
    %v132 = vadd.f32 %v63, %v131
    %v133 = vpop.f32.mrb[0].mxu0
    %134 = vdwg.mxu0
    %135 = vst [vmem:[#allocation7] sm:$0xff] %v132
    // Predicated region
    $region22: #{tpu_custom_call.1} parent=1 // pred_check
      _
    $region23: #{tpu_custom_call.1} parent=1 // pred_check_branch
      %137 = sbr.rel (0) target = $region25
    $region24: #{tpu_custom_call.1} parent=1 // pred_region
      %s139 = ssub.s32 128, 128
      %140 = vsyncadd [#allocation4], %s139
      %s142 = sshll.u32 [#allocation7], 4
      %s143 = int_to_ptr.vmem [resolvable:$true] %s142
      %145 = dma.vmem_to_hbm [thread:$0]  %s143, 128, %s3, [#allocation4]
    $region25: #{tpu_custom_call.1} parent=1 // pred_fallthru
      _
    // Predicated region
    $region26: #{tpu_custom_call.1} parent=1 // pred_check
      _
    $region27: #{tpu_custom_call.1} parent=1 // pred_check_branch
      %147 = sbr.rel (0) target = $region29
    $region28: #{tpu_custom_call.1} parent=1 // pred_region
      %148 = dma.done [#allocation4], 128
    $region29: #{tpu_custom_call.1} parent=1 // pred_fallthru
      _
    %149 = vsyncpa [#allocation3], 1
    %150 = vsyncpa [#allocation6], 1
    %151 = vsyncpa [#allocation4], 1

</llo_original>
